<compile_context>
chip_gen: v7x
topology: tpu7x:2x2x1
jax: 0.10.0
libtpu: 0.0.40
codegen_flags: <defaults>
</compile_context>

<pallas_src>
import jax
import jax.numpy as jnp
from jax.experimental import pallas as pl
from jax.experimental.pallas import tpu as pltpu


def _ibot_mask_kernel(x_ref, pos_ref, m_ref, me_ref, o_ref):
    # x_ref  : (TB, S, D)  tokens for TB batch elements
    # pos_ref: (1,  S, D)  positional embedding (same block every step)
    # m_ref  : (TB, S, 1)  int8, 1 where the token is masked (CLS slot is 0)
    # me_ref : (1, D)      learnable masked embedding
    x = x_ref[...]
    pos = pos_ref[...].astype(x.dtype)              # (1, S, D) broadcasts over TB
    m = m_ref[...] != 0                             # (TB, S, 1) bool
    me = me_ref[...].astype(x.dtype)[:, None, :]    # (1, 1, D)
    o_ref[...] = (jnp.where(m, me, x) + pos).astype(o_ref.dtype)


def _add_pos_kernel(x_ref, pos_ref, o_ref):
    # mask=None fast path: pure x + pos_embed.
    x = x_ref[...]
    o_ref[...] = (x + pos_ref[...].astype(x.dtype)).astype(o_ref.dtype)


def _vmem_limit_bytes():
    """Scoped VMEM limit: ~3/4 of physical per-core VMEM (64 MiB on v7x,
    128 MiB on v5e/v6e), leaving headroom for compiler-internal scratch."""
    cap = 64 << 20  # conservative default (v7x per-TensorCore)
    try:
        info = pltpu.get_tpu_info()
        cap = int(getattr(info, "vmem_capacity_bytes", cap))
    except Exception:
        pass
    return (cap * 3) // 4


def _choose_tb(B, S, D, itemsize, vmem_limit):
    """Batch elements per grid step, sized to the VMEM budget."""
    per_elem = S * D * itemsize        # one batch element of x (or of out)
    mask_elem = S * 128                # int8 (., S, 1) block, lane-padded to 128
    resident = 2 * per_elem + 4 * D    # resident pos_embed block + masked_embed
    budget = vmem_limit - resident - (1 << 20)        # 1 MiB slack
    tb = budget // (4 * per_elem + 2 * mask_elem)     # double-buffered x/out/mask
    tb = max(1, min(int(tb), B))
    if B > 1:
        # Keep >= 2 grid steps so the "parallel" batch axis can still split
        # across the two TensorCores on megacore parts (v7x).
        tb = min(tb, pl.cdiv(B, 2))
    return tb


def ibot_masked_modeling(x, pos_embed, masked_embed, mask=None):
    """x: (B, S, D); pos_embed: (1, S, D); masked_embed: (1, D);
    mask: optional (B, H, W) bool with H*W == S - 1."""
    B, S, D = x.shape
    itemsize = jnp.dtype(x.dtype).itemsize
    vmem_limit = _vmem_limit_bytes()
    tb = _choose_tb(B, S, D, itemsize, vmem_limit)
    grid = (pl.cdiv(B, tb),)
    cparams = pltpu.CompilerParams(
        dimension_semantics=("parallel",),
        vmem_limit_bytes=int(vmem_limit),
    )

    if mask is None:
        # No mask: skip building a zero mask array entirely.
        return pl.pallas_call(
            _add_pos_kernel,
            out_shape=jax.ShapeDtypeStruct((B, S, D), x.dtype),
            grid=grid,
            in_specs=[
                pl.BlockSpec((tb, S, D), lambda b: (b, 0, 0)),   # x
                pl.BlockSpec((1, S, D), lambda b: (0, 0, 0)),    # pos (resident)
            ],
            out_specs=pl.BlockSpec((tb, S, D), lambda b: (b, 0, 0)),
            input_output_aliases={0: 0},
            compiler_params=cparams,
        )(x, pos_embed)

    # Full-length token mask: CLS token (index 0) is never masked.
    m_tok = mask.reshape(B, -1).astype(jnp.int8)                # (B, N)
    cls_pad = jnp.zeros((B, 1), jnp.int8)
    m_full = jnp.concatenate([cls_pad, m_tok], axis=1)[..., None]  # (B, S, 1)

    return pl.pallas_call(
        _ibot_mask_kernel,
        out_shape=jax.ShapeDtypeStruct((B, S, D), x.dtype),
        grid=grid,
        in_specs=[
            pl.BlockSpec((tb, S, D), lambda b: (b, 0, 0)),   # x
            pl.BlockSpec((1, S, D), lambda b: (0, 0, 0)),    # pos_embed (resident)
            pl.BlockSpec((tb, S, 1), lambda b: (b, 0, 0)),   # token mask (int8)
            pl.BlockSpec((1, D), lambda b: (0, 0)),          # masked_embed
        ],
        out_specs=pl.BlockSpec((tb, S, D), lambda b: (b, 0, 0)),
        input_output_aliases={0: 0},
        compiler_params=cparams,
    )(x, pos_embed, m_full, masked_embed)


def _reference(x, pos_embed, masked_embed, mask):
    """Pure-JAX reference matching the PyTorch forward exactly."""
    if mask is not None:
        B = x.shape[0]
        m_tok = mask.reshape(B, -1)                                   # (B, N)
        feat = jnp.where(m_tok[..., None],
                         masked_embed[None].astype(x.dtype),          # (1,1,D)
                         x[:, 1:])
        x = x.at[:, 1:].set(feat)
    return x + pos_embed


if __name__ == "__main__":
    key = jax.random.PRNGKey(0)
    k_x, k_pos, k_me, k_mask = jax.random.split(key, 4)

    B, D = 4, 128          # lane-dense D (real ViT dims 768/1024 are also fine)
    H = W = 4
    N = H * W
    S = 1 + N              # CLS token + patch tokens

    x = jax.random.normal(k_x, (B, S, D), dtype=jnp.float32)
    pos_embed = jax.random.normal(k_pos, (1, S, D), dtype=jnp.float32) * 0.02
    # learnable masked_embed (nn.Parameter of shape (1, embed_dim)); non-zero
    # so the replacement is observable.
    masked_embed = jax.random.normal(k_me, (1, D), dtype=jnp.float32) * 0.02
    mask = jax.random.bernoulli(k_mask, p=0.4, shape=(B, H, W))

    # Compute references up front (kernel output aliases its x input).
    ref = _reference(x, pos_embed, masked_embed, mask)
    ref_nomask = x + pos_embed

    out = ibot_masked_modeling(jnp.copy(x), pos_embed, masked_embed, mask)
    out = jax.block_until_ready(out)
    assert out.shape == (B, S, D)
    assert jnp.allclose(out, ref, atol=1e-6, rtol=1e-6), "mismatch vs reference"

    # mask=None path (forward just returns x + pos_embed)
    out_nomask = jax.block_until_ready(
        ibot_masked_modeling(jnp.copy(x), pos_embed, masked_embed, None))
    assert jnp.allclose(out_nomask, ref_nomask, atol=1e-6, rtol=1e-6)

    print("KERNEL_OK")
</pallas_src>

<mosaic_0001>
module attributes {stable_mosaic.version = 11 : i64} {
  func.func @_ibot_mask_kernel(%arg0: i32, %arg1: memref<2x17x128xf32, #tpu.memory_space<vmem>>, %arg2: memref<1x17x128xf32, #tpu.memory_space<vmem>>, %arg3: memref<2x17x1xi8, #tpu.memory_space<vmem>>, %arg4: memref<1x128xf32, #tpu.memory_space<vmem>>, %arg5: memref<2x17x128xf32, #tpu.memory_space<vmem>>) attributes {dimension_semantics = [#tpu.dimension_semantics<parallel>], iteration_bounds = array<i64: 2>, scalar_prefetch = 0 : i64, scratch_operands = 0 : i64, tpu.core_type = #tpu.core_type<tc>, window_params = [{transform_indices = @transform_0, window_bounds = array<i64: 2, 17, 128>}, {pipeline_mode = #tpu.pipeline_mode<synchronous>, transform_indices = @transform_1, window_bounds = array<i64: 1, 17, 128>}, {transform_indices = @transform_2, window_bounds = array<i64: 2, 17, 1>}, {pipeline_mode = #tpu.pipeline_mode<synchronous>, transform_indices = @transform_3, window_bounds = array<i64: 1, 128>}, {transform_indices = @transform_4, window_bounds = array<i64: 2, 17, 128>}]} {
    %c0 = arith.constant 0 : index
    %c0_0 = arith.constant 0 : index
    %c0_1 = arith.constant 0 : index
    %0 = vector.load %arg1[%c0, %c0_0, %c0_1] : memref<2x17x128xf32, #tpu.memory_space<vmem>>, vector<2x17x128xf32>
    %c0_2 = arith.constant 0 : index
    %c0_3 = arith.constant 0 : index
    %c0_4 = arith.constant 0 : index
    %1 = vector.load %arg2[%c0_2, %c0_3, %c0_4] : memref<1x17x128xf32, #tpu.memory_space<vmem>>, vector<1x17x128xf32>
    %c0_5 = arith.constant 0 : index
    %c0_6 = arith.constant 0 : index
    %c0_7 = arith.constant 0 : index
    %2 = vector.load %arg3[%c0_5, %c0_6, %c0_7] : memref<2x17x1xi8, #tpu.memory_space<vmem>>, vector<2x17x1xi8>
    %c0_i8 = arith.constant 0 : i8
    %3 = vector.broadcast %c0_i8 : i8 to vector<2x17x1xi8>
    %4 = arith.cmpi ne, %2, %3 : vector<2x17x1xi8>
    %c0_8 = arith.constant 0 : index
    %c0_9 = arith.constant 0 : index
    %5 = vector.load %arg4[%c0_8, %c0_9] : memref<1x128xf32, #tpu.memory_space<vmem>>, vector<1x128xf32>
    %6 = vector.shape_cast %5 : vector<1x128xf32> to vector<1x1x128xf32>
    %7 = vector.shape_cast %4 : vector<2x17x1xi1> to vector<2x17x1xi1>
    %8 = vector.broadcast %7 : vector<2x17x1xi1> to vector<2x17x128xi1>
    %9 = vector.shape_cast %6 : vector<1x1x128xf32> to vector<1x1x128xf32>
    %10 = vector.broadcast %9 : vector<1x1x128xf32> to vector<2x17x128xf32>
    %11 = arith.select %8, %10, %0 : vector<2x17x128xi1>, vector<2x17x128xf32>
    %12 = vector.broadcast %1 : vector<1x17x128xf32> to vector<2x17x128xf32>
    %13 = arith.addf %11, %12 : vector<2x17x128xf32>
    %c0_10 = arith.constant 0 : index
    %c0_11 = arith.constant 0 : index
    %c0_12 = arith.constant 0 : index
    %14 = vector.load %arg5[%c0_10, %c0_11, %c0_12] : memref<2x17x128xf32, #tpu.memory_space<vmem>>, vector<2x17x128xf32>
    tpu.vector_store %arg5[%c0_10, %c0_11, %c0_12], %13 {strides = array<i32>} : memref<2x17x128xf32, #tpu.memory_space<vmem>>, vector<2x17x128xf32>,
    return
  }
  func.func @transform_0(%arg0: i32) -> (i32, i32, i32) {
    %c0_i32 = arith.constant 0 : i32
    %c0_i32_0 = arith.constant 0 : i32
    %c0_i32_1 = arith.constant 0 : i32
    return %arg0, %c0_i32, %c0_i32_0 : i32, i32, i32
  }
  func.func @transform_1(%arg0: i32) -> (i32, i32, i32) {
    %c0_i32 = arith.constant 0 : i32
    %c0_i32_0 = arith.constant 0 : i32
    %c0_i32_1 = arith.constant 0 : i32
    %c0_i32_2 = arith.constant 0 : i32
    return %c0_i32, %c0_i32_0, %c0_i32_1 : i32, i32, i32
  }
  func.func @transform_2(%arg0: i32) -> (i32, i32, i32) {
    %c0_i32 = arith.constant 0 : i32
    %c0_i32_0 = arith.constant 0 : i32
    %c0_i32_1 = arith.constant 0 : i32
    return %arg0, %c0_i32, %c0_i32_0 : i32, i32, i32
  }
  func.func @transform_3(%arg0: i32) -> (i32, i32) {
    %c0_i32 = arith.constant 0 : i32
    %c0_i32_0 = arith.constant 0 : i32
    %c0_i32_1 = arith.constant 0 : i32
    return %c0_i32, %c0_i32_0 : i32, i32
  }
  func.func @transform_4(%arg0: i32) -> (i32, i32, i32) {
    %c0_i32 = arith.constant 0 : i32
    %c0_i32_0 = arith.constant 0 : i32
    %c0_i32_1 = arith.constant 0 : i32
    return %arg0, %c0_i32, %c0_i32_0 : i32, i32, i32
  }
}

</mosaic_0001>

<llo_original>
// kernel: tpu_custom_call.1
$region0: #{tpu_custom_call.1}
  #allocation0 [shape = 'u32[]', space=smem, size = 0x4, offset = 0x4, fixed_abs, tag = 'smem constant byte address 0x4 - core index']
  #allocation1 [shape = 'u32[144,128]{1,0:T(1,128)}', space=vmem, size = 0x12000, scoped, tag = 'internal scratch']
  %s0 = inlined_call_operand.vmem [shape: f32[4,17,128], index: 0, kind: input, shape index: {}, may-alias: {0,4}]
  %s1 = inlined_call_operand.vmem [shape: f32[1,17,128], index: 1, kind: input, shape index: {}]
  %s2 = inlined_call_operand.vmem [shape: s8[4,17,1], index: 2, kind: input, shape index: {}]
  %s3 = inlined_call_operand.vmem [shape: f32[1,128], index: 3, kind: input, shape index: {}]
  %s4 = inlined_call_operand.vmem [shape: f32[4,17,128], index: 4, kind: output, shape index: {}, may-alias: {0,4}]
  %s5 = sld [smem:[#allocation0]]
  $region49: #{tpu_custom_call.1} parent=0
    _
  %s7 = ssub.s32 1, %s5
  %s8 = scalar_select 0, %s7, %s5
  loop: start=0, step=1, limit=4
  $region2: #{tpu_custom_call.1} parent=0 // loop_pre_header
    _
  $region3: #{tpu_custom_call.1} parent=0 // loop_header
    %s10 = sphi 0, %s14
    %p11 = scmp.ge.s32.totalorder %s10, 4
    %s20 = sphi 0, %s22
    %s23 = sphi 0, %s20
    %s24 = sphi 0, %s23
    %s40 = sphi 0, %s24
    %s44 = sphi 0, %s44
    %s46 = sphi 0, %s44
    %s47 = sphi 0, %s46
    %s61 = sphi 0, %s47
    %s67 = sphi 0, %s69
    %s70 = sphi 0, %s67
    %s71 = sphi 0, %s70
    %s87 = sphi 0, %s71
    %s91 = sphi 0, %s91
    %s93 = sphi 0, %s91
    %s94 = sphi 0, %s93
    %s108 = sphi 0, %s94
    %s114 = sphi 0, %s116
    %s117 = sphi 0, %s114
    %s118 = sphi 0, %s117
    %s134 = sphi 0, %s118
  $region4: #{tpu_custom_call.1} parent=0 // loop_header_branch
    %13 = sbr.rel (%p11) target = $region8
  $region5: #{tpu_custom_call.1} parent=0 // loop_body
    %s15 = ssub.s32 %s10, 1
    %s16 = ssub.s32 %s10, 2
    %s17 = sadd.s32 %s10, 1
    %s18 = ssub.s32 %s10, %s17
    %p19 = scmp.eq.s32.totalorder %s18, 0
    %s21 = sadd.s32 %s20, 1
    %s22 = scalar_select %p19, %s20, %s21
    %p25 = pneg %p19
    %p26 = scmp.eq.s32.totalorder %s10, 1
    %p27 = por %p25, %p26
    %p28 = scmp.ne.s32.totalorder %s20, %s23
    %p29 = scmp.eq.s32.totalorder %s10, 0
    %p30 = por %p28, %p29
    %p31 = scmp.ne.s32.totalorder %s20, %s23
    %p32 = scmp.eq.s32.totalorder %s15, 1
    %p33 = por %p31, %p32
    %p34 = scmp.ne.s32.totalorder %s23, %s24
    %p35 = scmp.eq.s32.totalorder %s15, 0
    %p36 = por %p34, %p35
    %p37 = scmp.ne.s32.totalorder %s23, %s24
    %p38 = scmp.eq.s32.totalorder %s16, 1
    %p39 = por %p37, %p38
    %p41 = scmp.ne.s32.totalorder %s24, %s40
    %p42 = scmp.eq.s32.totalorder %s16, 0
    %p43 = por %p41, %p42
    %s45 = sadd.s32 %s44, 1
    %p48 = scmp.eq.s32.totalorder %s10, 1
    %p49 = scmp.ne.s32.totalorder %s44, %s46
    %p50 = scmp.eq.s32.totalorder %s10, 0
    %p51 = por %p49, %p50
    %p52 = scmp.ne.s32.totalorder %s44, %s46
    %p53 = scmp.eq.s32.totalorder %s15, 1
    %p54 = por %p52, %p53
    %p55 = scmp.ne.s32.totalorder %s46, %s47
    %p56 = scmp.eq.s32.totalorder %s15, 0
    %p57 = por %p55, %p56
    %p58 = scmp.ne.s32.totalorder %s46, %s47
    %p59 = scmp.eq.s32.totalorder %s16, 1
    %p60 = por %p58, %p59
    %p62 = scmp.ne.s32.totalorder %s47, %s61
    %p63 = scmp.eq.s32.totalorder %s16, 0
    %p64 = por %p62, %p63
    %s65 = ssub.s32 %s10, %s17
    %p66 = scmp.eq.s32.totalorder %s65, 0
    %s68 = sadd.s32 %s67, 1
    %s69 = scalar_select %p66, %s67, %s68
    %p72 = pneg %p66
    %p73 = scmp.eq.s32.totalorder %s10, 1
    %p74 = por %p72, %p73
    %p75 = scmp.ne.s32.totalorder %s67, %s70
    %p76 = scmp.eq.s32.totalorder %s10, 0
    %p77 = por %p75, %p76
    %p78 = scmp.ne.s32.totalorder %s67, %s70
    %p79 = scmp.eq.s32.totalorder %s15, 1
    %p80 = por %p78, %p79
    %p81 = scmp.ne.s32.totalorder %s70, %s71
    %p82 = scmp.eq.s32.totalorder %s15, 0
    %p83 = por %p81, %p82
    %p84 = scmp.ne.s32.totalorder %s70, %s71
    %p85 = scmp.eq.s32.totalorder %s16, 1
    %p86 = por %p84, %p85
    %p88 = scmp.ne.s32.totalorder %s71, %s87
    %p89 = scmp.eq.s32.totalorder %s16, 0
    %p90 = por %p88, %p89
    %s92 = sadd.s32 %s91, 1
    %p95 = scmp.eq.s32.totalorder %s10, 1
    %p96 = scmp.ne.s32.totalorder %s91, %s93
    %p97 = scmp.eq.s32.totalorder %s10, 0
    %p98 = por %p96, %p97
    %p99 = scmp.ne.s32.totalorder %s91, %s93
    %p100 = scmp.eq.s32.totalorder %s15, 1
    %p101 = por %p99, %p100
    %p102 = scmp.ne.s32.totalorder %s93, %s94
    %p103 = scmp.eq.s32.totalorder %s15, 0
    %p104 = por %p102, %p103
    %p105 = scmp.ne.s32.totalorder %s93, %s94
    %p106 = scmp.eq.s32.totalorder %s16, 1
    %p107 = por %p105, %p106
    %p109 = scmp.ne.s32.totalorder %s94, %s108
    %p110 = scmp.eq.s32.totalorder %s16, 0
    %p111 = por %p109, %p110
    %s112 = ssub.s32 %s10, %s17
    %p113 = scmp.eq.s32.totalorder %s112, 0
    %s115 = sadd.s32 %s114, 1
    %s116 = scalar_select %p113, %s114, %s115
    %p119 = pneg %p113
    %p120 = scmp.eq.s32.totalorder %s10, 1
    %p121 = por %p119, %p120
    %p122 = scmp.ne.s32.totalorder %s114, %s117
    %p123 = scmp.eq.s32.totalorder %s10, 0
    %p124 = por %p122, %p123
    %p125 = scmp.ne.s32.totalorder %s114, %s117
    %p126 = scmp.eq.s32.totalorder %s15, 1
    %p127 = por %p125, %p126
    %p128 = scmp.ne.s32.totalorder %s117, %s118
    %p129 = scmp.eq.s32.totalorder %s15, 0
    %p130 = por %p128, %p129
    %p131 = scmp.ne.s32.totalorder %s117, %s118
    %p132 = scmp.eq.s32.totalorder %s16, 1
    %p133 = por %p131, %p132
    %p135 = scmp.ne.s32.totalorder %s118, %s134
    %p136 = scmp.eq.s32.totalorder %s16, 0
    %p137 = por %p135, %p136
    %p138 = scmp.le.s32.totalorder 1, %s10
    %p139 = scmp.lt.s32.totalorder %s10, 3
    %p140 = pnand %p138, %p139
    %p141 = pneg %p140
    // Predicated region
    $region9: #{tpu_custom_call.1} parent=5 // pred_check
      _
    $region10: #{tpu_custom_call.1} parent=5 // pred_check_branch
      %143 = sbr.rel (%p140) target = $region12
    $region11: #{tpu_custom_call.1} parent=5 // pred_region
      %s144 = ssub.s32 %s10, 1
      // Predicated region
      $region13: #{tpu_custom_call.1} parent=11 // pred_check
        %p145 = pneg %p57
      $region14: #{tpu_custom_call.1} parent=11 // pred_check_branch
        %147 = sbr.rel (%p145) target = $region16
      $region15: #{tpu_custom_call.1} parent=11 // pred_region
        _
      $region16: #{tpu_custom_call.1} parent=11 // pred_fallthru
        _
      // Predicated region
      $region17: #{tpu_custom_call.1} parent=11 // pred_check
        %p148 = pneg %p104
      $region18: #{tpu_custom_call.1} parent=11 // pred_check_branch
        %150 = sbr.rel (%p148) target = $region20
      $region19: #{tpu_custom_call.1} parent=11 // pred_region
        _
      $region20: #{tpu_custom_call.1} parent=11 // pred_fallthru
        _
    $region12: #{tpu_custom_call.1} parent=5 // pred_fallthru
      _
    %p151 = scmp.lt.s32.totalorder %s10, 2
    // Predicated region
    $region21: #{tpu_custom_call.1} parent=5 // pred_check
      %p152 = pneg %p151
    $region22: #{tpu_custom_call.1} parent=5 // pred_check_branch
      %154 = sbr.rel (%p152) target = $region24
    $region23: #{tpu_custom_call.1} parent=5 // pred_region
      // Predicated region
      $region25: #{tpu_custom_call.1} parent=23 // pred_check
        %p155 = pneg %p30
      $region26: #{tpu_custom_call.1} parent=23 // pred_check_branch
        %157 = sbr.rel (%p155) target = $region28
      $region27: #{tpu_custom_call.1} parent=23 // pred_region
        %s158 = smul.u32 2, %s10
        %p159 = scmp.lt.s32.totalorder %s158, 3
        %s160 = scalar_select %p159, %s158, 3
        %s161 = smul.addr %s160, 3
        %s162 = smul.addr %s161, 8
        %s163 = scalar_lea.vmem %s0, %s162
        %s164 = smul.u32 2, %s10
      $region28: #{tpu_custom_call.1} parent=23 // pred_fallthru
        _
      // Predicated region
      $region29: #{tpu_custom_call.1} parent=23 // pred_check
        %p165 = pneg %p77
      $region30: #{tpu_custom_call.1} parent=23 // pred_check_branch
        %167 = sbr.rel (%p165) target = $region32
      $region31: #{tpu_custom_call.1} parent=23 // pred_region
        %s168 = smul.u32 2, %s10
        %p169 = scmp.lt.s32.totalorder %s168, 3
        %s170 = scalar_select %p169, %s168, 3
        %s171 = smul.addr %s170, 3
        %s172 = smul.addr %s171, 2
        %s173 = scalar_lea.vmem %s2, %s172
        %s174 = smul.u32 2, %s10
      $region32: #{tpu_custom_call.1} parent=23 // pred_fallthru
        _
    $region24: #{tpu_custom_call.1} parent=5 // pred_fallthru
      _
    %p175 = scmp.le.s32.totalorder 1, %s10
    %p176 = scmp.lt.s32.totalorder %s10, 3
    %p177 = pnand %p175, %p176
    %p178 = pneg %p177
    // Predicated region
    $region33: #{tpu_custom_call.1} parent=5 // pred_check
      _
    $region34: #{tpu_custom_call.1} parent=5 // pred_check_branch
      %180 = sbr.rel (%p177) target = $region36
    $region35: #{tpu_custom_call.1} parent=5 // pred_region
      %s181 = ssub.s32 %s10, 1
      %s182 = smul.u32 2, %s15
      %p183 = scmp.lt.s32.totalorder %s182, 3
      %s184 = scalar_select %p183, %s182, 3
      %s185 = smul.addr %s184, 3
      %s186 = smul.addr %s185, 8
      %s187 = scalar_lea.vmem %s0, %s186
      %p188 = pneg %p36
      %p189 = pneg %p33
      %p190 = pneg %p57
      %p191 = pneg %p54
      %s192 = smul.u32 2, %s15
      %p193 = scmp.lt.s32.totalorder %s192, 3
      %s194 = scalar_select %p193, %s192, 3
      %s195 = smul.addr %s194, 3
      %s196 = smul.addr %s195, 2
      %s197 = scalar_lea.vmem %s2, %s196
      %p198 = pneg %p83
      %p199 = pneg %p80
      %p200 = pneg %p104
      %p201 = pneg %p101
      %p202 = pneg %p130
      %p203 = pneg %p127
      %s204 = smul.u32 2, %s15
      %p205 = scmp.lt.s32.totalorder %s204, 3
      %s206 = scalar_select %p205, %s204, 3
      %s207 = smul.addr %s206, 3
      %s208 = smul.addr %s207, 8
      %s209 = scalar_lea.vmem %s4, %s208
      %s210 = smul.u32 2, %s15
      %p211 = scmp.lt.s32.totalorder %s210, 3
      %s212 = scalar_select %p211, %s210, 3
      %s213 = smul.addr %s212, 3
      %s214 = smul.addr %s213, 8
      %s215 = scalar_lea.vmem %s0, %s214
      %s216 = smul.u32 2, %s15
      %s217 = smul.u32 2, %s15
      %p218 = scmp.lt.s32.totalorder %s217, 3
      %s219 = scalar_select %p218, %s217, 3
      %s220 = smul.addr %s219, 3
      %s221 = smul.addr %s220, 2
      %s222 = scalar_lea.vmem %s2, %s221
      %s223 = smul.u32 2, %s15
      %s224 = smul.u32 2, %s15
      %p225 = scmp.lt.s32.totalorder %s224, 3
      %s226 = scalar_select %p225, %s224, 3
      %s227 = smul.addr %s226, 3
      %s228 = smul.addr %s227, 8
      %s229 = scalar_lea.vmem %s4, %s228
      %s230 = smul.u32 2, %s15
      %v233 = vld [vmem:[%s215] sm:$0xff]
      %v234 = vld [vmem:[%s215 + $0x8] sm:$0xff]
      %v235 = vld [vmem:[%s215 + $0x10] sm:$0x1]
      %v236 = vld [vmem:[%s215 + $0x18] sm:$0xff]
      %v237 = vld [vmem:[%s215 + $0x20] sm:$0xff]
      %v238 = vld [vmem:[%s215 + $0x28] sm:$0x1]
      %v239 = vld [vmem:[%s1] sm:$0xff]
      %v240 = vld [vmem:[%s1 + $0x8] sm:$0xff]
      %v241 = vld [vmem:[%s1 + $0x10] sm:$0x1]
      %v242 = vld [vmem:[%s222] sm:$0x3]
      %v243 = vld [vmem:[%s222 + $0x2] sm:$0x3]
      %v244 = vld [vmem:[%s222 + $0x4] sm:$0x1]
      %v245 = vld [vmem:[%s222 + $0x6] sm:$0x3]
      %v246 = vld [vmem:[%s222 + $0x8] sm:$0x3]
      %v247 = vld [vmem:[%s222 + $0xa] sm:$0x1]
      %vm248 = vnez %v242
      %vm249 = vnez %v243
      %vm250 = vnez %v244
      %vm251 = vnez %v245
      %vm252 = vnez %v246
      %vm253 = vnez %v247
      %v254 = vld [vmem:[%s3] sm:$0x1]
      %v255 = vsel %vm248, 16843009, 0
      %v256 = vsel %vm249, 16843009, 0
      %v257 = vsel %vm250, 16843009, 0
      %v258 = vsel %vm251, 16843009, 0
      %v259 = vsel %vm252, 16843009, 0
      %v260 = vsel %vm253, 16843009, 0
      %v261 = vunpack.c.0.s8 %v255
      %v262 = vunpack.c.0.s8 %v256
      %v263 = vunpack.c.0.s8 %v257
      %v264 = vunpack.c.0.s8 %v258
      %v265 = vunpack.c.0.s8 %v259
      %v266 = vunpack.c.0.s8 %v260
      %vm267 = vcmp.ne.s32.totalorder %v261, 0
      %vm268 = vcmp.ne.s32.totalorder %v262, 0
      %vm269 = vcmp.ne.s32.totalorder %v263, 0
      %vm270 = vcmp.ne.s32.totalorder %v264, 0
      %vm271 = vcmp.ne.s32.totalorder %v265, 0
      %vm272 = vcmp.ne.s32.totalorder %v266, 0
      %v273 = vsel %vm267, 1, 0
      %v274 = vsel %vm268, 1, 0
      %v275 = vsel %vm269, 1, 0
      %v276 = vsel %vm270, 1, 0
      %v277 = vsel %vm271, 1, 0
      %v278 = vsel %vm272, 1, 0
      %279 = vset.pattern.permute.xlu0 0
      %280 = vperm.xlu0 %279, %v273
      %v281 = vpop.permute.xlu0 %280
      %282 = vset.pattern.permute.xlu0 0
      %283 = vperm.xlu0 %282, %v274
      %v284 = vpop.permute.xlu0 %283
      %285 = vset.pattern.permute.xlu0 0
      %286 = vperm.xlu0 %285, %v275
      %v287 = vpop.permute.xlu0 %286
      %288 = vset.pattern.permute.xlu0 0
      %289 = vperm.xlu0 %288, %v276
      %v290 = vpop.permute.xlu0 %289
      %291 = vset.pattern.permute.xlu0 0
      %292 = vperm.xlu0 %291, %v277
      %v293 = vpop.permute.xlu0 %292
      %294 = vset.pattern.permute.xlu0 0
      %295 = vperm.xlu0 %294, %v278
      %v296 = vpop.permute.xlu0 %295
      %vm297 = vcmp.eq.s32.totalorder %v281, 1
      %vm298 = vcmp.eq.s32.totalorder %v284, 1
      %vm299 = vcmp.eq.s32.totalorder %v287, 1
      %vm300 = vcmp.eq.s32.totalorder %v290, 1
      %vm301 = vcmp.eq.s32.totalorder %v293, 1
      %vm302 = vcmp.eq.s32.totalorder %v296, 1
      %v304 = vlaneseq
      %v305 = vshrl.u32 %v304, 7
      %v306 = vsub.s32 0, %v305
      %v307 = vrot.slane %v254, %v306
      %v309 = vsel %vm297, %v307, %v233
      %v310 = vsel %vm298, %v307, %v234
      %v311 = vsel %vm299, %v307, %v235
      %v312 = vsel %vm300, %v307, %v236
      %v313 = vsel %vm301, %v307, %v237
      %v314 = vsel %vm302, %v307, %v238
      %v315 = vadd.f32 %v309, %v239
      %v316 = vadd.f32 %v310, %v240
      %v317 = vadd.f32 %v311, %v241
      %v318 = vadd.f32 %v312, %v239
      %v319 = vadd.f32 %v313, %v240
      %v320 = vadd.f32 %v314, %v241
      %321 = vst [vmem:[%s229] sm:$0xff] %v315
      %322 = vst [vmem:[%s229 + $0x8] sm:$0xff] %v316
      %323 = vst [vmem:[%s229 + $0x10] sm:$0x1] %v317
      %324 = vst [vmem:[%s229 + $0x18] sm:$0xff] %v318
      %325 = vst [vmem:[%s229 + $0x20] sm:$0xff] %v319
      %326 = vst [vmem:[%s229 + $0x28] sm:$0x1] %v320
      %s327 = smul.u32 2, %s15
      %p328 = scmp.lt.s32.totalorder %s327, 3
      %s329 = scalar_select %p328, %s327, 3
      %s330 = smul.addr %s329, 3
      %s331 = smul.addr %s330, 8
      %s332 = scalar_lea.vmem %s4, %s331
      // Predicated region
      $region37: #{tpu_custom_call.1} parent=35 // pred_check
        %p333 = pneg %p127
      $region38: #{tpu_custom_call.1} parent=35 // pred_check_branch
        %335 = sbr.rel (%p333) target = $region40
      $region39: #{tpu_custom_call.1} parent=35 // pred_region
        %s336 = smul.u32 2, %s15
      $region40: #{tpu_custom_call.1} parent=35 // pred_fallthru
        _
    $region36: #{tpu_custom_call.1} parent=5 // pred_fallthru
      _
    %p337 = scmp.le.s32.totalorder 2, %s10
    // Predicated region
    $region41: #{tpu_custom_call.1} parent=5 // pred_check
      %p338 = pneg %p337
    $region42: #{tpu_custom_call.1} parent=5 // pred_check_branch
      %340 = sbr.rel (%p338) target = $region44
    $region43: #{tpu_custom_call.1} parent=5 // pred_region
      %s341 = ssub.s32 %s10, 2
      // Predicated region
      $region45: #{tpu_custom_call.1} parent=43 // pred_check
        %p342 = pneg %p133
      $region46: #{tpu_custom_call.1} parent=43 // pred_check_branch
        %344 = sbr.rel (%p342) target = $region48
      $region47: #{tpu_custom_call.1} parent=43 // pred_region
        %s345 = smul.u32 2, %s16
        %p346 = scmp.lt.s32.totalorder %s345, 3
        %s347 = scalar_select %p346, %s345, 3
        %s348 = smul.addr %s347, 3
        %s349 = smul.addr %s348, 8
        %s350 = scalar_lea.vmem %s4, %s349
      $region48: #{tpu_custom_call.1} parent=43 // pred_fallthru
        _
    $region44: #{tpu_custom_call.1} parent=5 // pred_fallthru
      _
  $region6: #{tpu_custom_call.1} parent=0 // loop_footer
    %s14 = sadd.s32 1, %s10
  $region7: #{tpu_custom_call.1} parent=0 // loop_footer_branch
    %9 = sbr.rel target = $region3
  $region8: #{tpu_custom_call.1} parent=0 // loop_exit
    _

</llo_original>
